<compile_context>
chip_gen: v6e
topology: v6e:2x2x1
jax: 0.10.0
libtpu: 0.0.40
codegen_flags: <defaults>
</compile_context>

<pallas_src>
import functools

import jax
import jax.numpy as jnp
from jax.experimental import pallas as pl
from jax.experimental.pallas import tpu as pltpu


# ----------------------------------------------------------------------------
# Path 0: faithful nn.Identity forward -- trace-time no-op.
# ----------------------------------------------------------------------------
def identity(x: jax.Array) -> jax.Array:
    """Identity forward pass: returns x unchanged (zero bytes moved)."""
    return x


# ----------------------------------------------------------------------------
# Shared helpers.
# ----------------------------------------------------------------------------
_LANE_CHOICES = (16384, 8192, 4096, 2048, 1024, 512, 256, 128)


def _row_align(dtype) -> int:
    """Sublane packing granularity: (8,128) f32, (16,128) bf16, (32,128) i8."""
    itemsize = jnp.dtype(dtype).itemsize
    if itemsize > 4:
        return 8
    return max(8, (8 * 4) // max(1, itemsize))


def _select_tuning():
    """(target_block_bytes, vmem_limit_bytes) chosen per TPU generation."""
    try:
        if jax.devices()[0].platform != "tpu":
            return 2 * 1024 * 1024, None
        vmem = pltpu.get_tpu_info().vmem_capacity_bytes
        if vmem <= 96 * 1024 * 1024:
            # v7x: 64 MiB VMEM, 3.2 TB/s HBM -> bigger blocks, raised limit.
            return 8 * 1024 * 1024, 48 * 1024 * 1024
        # v5e / v6e: 128 MiB physical VMEM.
        return 4 * 1024 * 1024, 32 * 1024 * 1024
    except Exception:
        # Conservative defaults (safe under every generation's scoped default).
        return 2 * 1024 * 1024, None


def _flatten_lane_dense(x: jax.Array):
    """Split flat x into a lane-dense (rows, lanes) main slab plus tiny tail."""
    total = int(x.size)
    flat = x.reshape(-1)
    main = (total // 128) * 128
    if main == 0:
        return None, flat                     # tiny array: all tail
    lanes = next(l for l in _LANE_CHOICES if main % l == 0)
    main2d = flat[:main].reshape(main // lanes, lanes)
    tail = flat[main:] if main < total else None
    return main2d, tail


# ----------------------------------------------------------------------------
# Path 1: tiled VMEM streaming copy.
# ----------------------------------------------------------------------------
def _copy_kernel(x_ref, o_ref):
    # Full-tile, unmasked vector copy.
    o_ref[...] = x_ref[...]


def _tiled_copy_2d(x2d: jax.Array, block_bytes: int, vmem_limit) -> jax.Array:
    rows, lanes = x2d.shape
    itemsize = jnp.dtype(x2d.dtype).itemsize
    align = _row_align(x2d.dtype)

    target_rows = max(1, block_bytes // (lanes * itemsize))
    if rows <= target_rows:
        tile_rows = rows                      # single block along rows
    else:
        tile_rows = max(align, (target_rows // align) * align)

    # TODO(synk): on v7x, pltpu.CORE_PARALLEL would shard the row grid across
    # both TensorCores; "parallel" is kept here for portability.
    compiler_params = pltpu.CompilerParams(
        dimension_semantics=("parallel",),
        vmem_limit_bytes=vmem_limit,
    )
    return pl.pallas_call(
        _copy_kernel,
        out_shape=jax.ShapeDtypeStruct((rows, lanes), x2d.dtype),
        grid=(pl.cdiv(rows, tile_rows),),
        in_specs=[pl.BlockSpec((tile_rows, lanes), lambda i: (i, 0))],
        out_specs=pl.BlockSpec((tile_rows, lanes), lambda i: (i, 0)),
        compiler_params=compiler_params,
    )(x2d)


def _small_copy(flat: jax.Array) -> jax.Array:
    """Single-block copy for tiny tails (< 128 elements)."""
    n = int(flat.size)
    out = pl.pallas_call(
        _copy_kernel,
        out_shape=jax.ShapeDtypeStruct((1, n), flat.dtype),
    )(flat.reshape(1, n))
    return out.reshape(n)


def identity_copy(x: jax.Array) -> jax.Array:
    """Identity that materializes a fresh buffer via a tiled VMEM copy."""
    orig_shape = x.shape
    block_bytes, vmem_limit = _select_tuning()
    main2d, tail = _flatten_lane_dense(x)

    pieces = []
    if main2d is not None:
        pieces.append(_tiled_copy_2d(main2d, block_bytes, vmem_limit).reshape(-1))
    if tail is not None:
        pieces.append(_small_copy(tail))
    out = pieces[0] if len(pieces) == 1 else jnp.concatenate(pieces)
    return out.reshape(orig_shape)


# ----------------------------------------------------------------------------
# Path 2: chunked HBM -> HBM DMA copy (no VMEM staging, no per-step overhead).
# ----------------------------------------------------------------------------
def _dma_copy_kernel(x_hbm, o_hbm, sem, *, row_splits):
    n = len(row_splits) - 1
    copies = []
    for c in range(n):                        # issue all chunk DMAs (in flight)
        r0, r1 = row_splits[c], row_splits[c + 1]
        cp = pltpu.make_async_copy(
            x_hbm.at[pl.ds(r0, r1 - r0), :],
            o_hbm.at[pl.ds(r0, r1 - r0), :],
            sem.at[c],
        )
        cp.start()
        copies.append(cp)
    for cp in copies:                         # then drain
        cp.wait()


def identity_copy_dma(x: jax.Array, *, max_chunks: int = 4) -> jax.Array:
    """Identity into a fresh buffer via direct chunked HBM->HBM DMAs."""
    orig_shape = x.shape
    main2d, tail = _flatten_lane_dense(x)

    pieces = []
    if main2d is not None:
        rows, lanes = main2d.shape
        align = _row_align(main2d.dtype)
        n_chunks = max(1, min(max_chunks, rows // align))
        base = rows // n_chunks
        splits = [0]
        for c in range(1, n_chunks):
            splits.append(min(rows, ((base * c) // align) * align))
        splits.append(rows)
        splits = sorted(set(splits))          # strictly increasing, non-empty chunks
        n = len(splits) - 1

        out2d = pl.pallas_call(
            functools.partial(_dma_copy_kernel, row_splits=tuple(splits)),
            out_shape=jax.ShapeDtypeStruct((rows, lanes), main2d.dtype),
            in_specs=[pl.BlockSpec(memory_space=pl.ANY)],
            out_specs=pl.BlockSpec(memory_space=pl.ANY),
            scratch_shapes=[pltpu.SemaphoreType.DMA((n,))],
        )(main2d)
        pieces.append(out2d.reshape(-1))
    if tail is not None:
        pieces.append(_small_copy(tail))
    out = pieces[0] if len(pieces) == 1 else jnp.concatenate(pieces)
    return out.reshape(orig_shape)


# ----------------------------------------------------------------------------
# Self-test.
# ----------------------------------------------------------------------------
if __name__ == "__main__":
    key = jax.random.PRNGKey(0)
    x = jax.random.normal(key, (2, 4, 16, 16), dtype=jnp.float32)

    # Path 0: trace-time identity (exact nn.Identity semantics).
    y0 = identity(x)
    jax.block_until_ready(y0)
    assert y0.shape == x.shape and y0.dtype == x.dtype
    assert bool(jnp.all(y0 == x))

    # Path 1: fresh buffer, tiled VMEM streaming copy.
    y1 = identity_copy(x)
    jax.block_until_ready(y1)
    assert y1.shape == x.shape and y1.dtype == x.dtype
    assert bool(jnp.all(y1 == x))

    # Path 2: fresh buffer, chunked HBM->HBM DMA copy.
    y2 = identity_copy_dma(x)
    jax.block_until_ready(y2)
    assert y2.shape == x.shape and y2.dtype == x.dtype
    assert bool(jnp.all(y2 == x))

    # Robustness: bf16 (dtype-aware alignment) + element count with no factor
    # of 128 (main slab + tail split instead of the old whole-array fallback).
    xb = jax.random.normal(key, (7, 37), dtype=jnp.float32).astype(jnp.bfloat16)
    for fn in (identity_copy, identity_copy_dma):
        yb = fn(xb)
        jax.block_until_ready(yb)
        assert yb.shape == xb.shape and yb.dtype == xb.dtype
        assert bool(jnp.all(yb == xb))

    print("KERNEL_OK")
</pallas_src>

<mosaic_0001>
module attributes {stable_mosaic.version = 11 : i64} {
  func.func @_copy_kernel(%arg0: i32, %arg1: memref<1x2048xf32, #tpu.memory_space<vmem>>, %arg2: memref<1x2048xf32, #tpu.memory_space<vmem>>) attributes {dimension_semantics = [#tpu.dimension_semantics<parallel>], iteration_bounds = array<i64: 1>, scalar_prefetch = 0 : i64, scratch_operands = 0 : i64, tpu.core_type = #tpu.core_type<tc>, window_params = [{transform_indices = @transform_0, window_bounds = array<i64: 1, 2048>}, {transform_indices = @transform_1, window_bounds = array<i64: 1, 2048>}]} {
    %c0 = arith.constant 0 : index
    %c0_0 = arith.constant 0 : index
    %0 = vector.load %arg1[%c0, %c0_0] : memref<1x2048xf32, #tpu.memory_space<vmem>>, vector<1x2048xf32>
    %c0_1 = arith.constant 0 : index
    %c0_2 = arith.constant 0 : index
    %1 = vector.load %arg2[%c0_1, %c0_2] : memref<1x2048xf32, #tpu.memory_space<vmem>>, vector<1x2048xf32>
    tpu.vector_store %arg2[%c0_1, %c0_2], %0 {strides = array<i32>} : memref<1x2048xf32, #tpu.memory_space<vmem>>, vector<1x2048xf32>,
    return
  }
  func.func @transform_0(%arg0: i32) -> (i32, i32) {
    %c0_i32 = arith.constant 0 : i32
    %c0_i32_0 = arith.constant 0 : i32
    return %arg0, %c0_i32 : i32, i32
  }
  func.func @transform_1(%arg0: i32) -> (i32, i32) {
    %c0_i32 = arith.constant 0 : i32
    %c0_i32_0 = arith.constant 0 : i32
    return %arg0, %c0_i32 : i32, i32
  }
}

</mosaic_0001>

<llo_original>
// kernel: tpu_custom_call.1
$region0: #{tpu_custom_call.1}
  #allocation0 [shape = 'u32[]', space=smem, size = 0x4, offset = 0x4, fixed_abs, tag = 'smem constant byte address 0x4 - core index']
  #allocation1 [shape = 'u32[144,128]{1,0:T(1,128)}', space=vmem, size = 0x12000, scoped, tag = 'internal scratch']
  %s0 = inlined_call_operand.hbm [shape: f32[1,2048], index: 0, kind: input, shape index: {}]
  %s1 = inlined_call_operand.hbm [shape: f32[1,2048], index: 1, kind: output, shape index: {}]
  %s2 = sld [smem:[#allocation0]]
  $region18: #{tpu_custom_call.1} parent=0
    _
  %s4 = ssub.s32 1, %s2
  %s5 = scalar_select 0, %s4, %s2
  $region1: #{tpu_custom_call.1} parent=0
    #allocation2 [shape = 'u8[8192]{0}', space=vmem, size = 0x2000, scoped, tag = 'input window, operand 0, single buffered']
    #allocation3 [shape = 's32[1]{0}', space=sflag, size = 0x4, scoped, tag = 'scoped memory for tpu_custom_call.1']
    #allocation4 [shape = 's32[1]{0}', space=sflag, size = 0x4, scoped, tag = 'scoped memory for tpu_custom_call.1']
    #allocation5 [shape = 'u8[8192]{0}', space=vmem, size = 0x2000, scoped, tag = 'output window, operand 0, single buffered']
    %6 = vsyncpa [#allocation3], 0
    %7 = vsyncpa [#allocation4], 0
    // Predicated region
    $region2: #{tpu_custom_call.1} parent=1 // pred_check
      _
    $region3: #{tpu_custom_call.1} parent=1 // pred_check_branch
      %9 = sbr.rel (0) target = $region5
    $region4: #{tpu_custom_call.1} parent=1 // pred_region
      %s11 = ssub.s32 256, 256
      %12 = vsyncadd [#allocation3], %s11
      %s14 = sshll.u32 [#allocation2], 4
      %s15 = int_to_ptr.vmem [resolvable:$true] %s14
      %17 = dma.hbm_to_vmem [thread:$0]  %s0, 256, %s15, [#allocation3]
    $region5: #{tpu_custom_call.1} parent=1 // pred_fallthru
      _
    // Predicated region
    $region6: #{tpu_custom_call.1} parent=1 // pred_check
      _
    $region7: #{tpu_custom_call.1} parent=1 // pred_check_branch
      %19 = sbr.rel (0) target = $region9
    $region8: #{tpu_custom_call.1} parent=1 // pred_region
      %20 = dma.done [#allocation3], 256
    $region9: #{tpu_custom_call.1} parent=1 // pred_fallthru
      _
    %v21 = vld [vmem:[#allocation2] sm:$0xff]
    %v22 = vld [vmem:[#allocation2 + $0x8] sm:$0xff]
    %23 = vst [vmem:[#allocation5] sm:$0xff] %v21
    %24 = vst [vmem:[#allocation5 + $0x8] sm:$0xff] %v22
    // Predicated region
    $region10: #{tpu_custom_call.1} parent=1 // pred_check
      _
    $region11: #{tpu_custom_call.1} parent=1 // pred_check_branch
      %26 = sbr.rel (0) target = $region13
    $region12: #{tpu_custom_call.1} parent=1 // pred_region
      %s28 = ssub.s32 256, 256
      %29 = vsyncadd [#allocation4], %s28
      %s31 = sshll.u32 [#allocation5], 4
      %s32 = int_to_ptr.vmem [resolvable:$true] %s31
      %34 = dma.vmem_to_hbm [thread:$0]  %s32, 256, %s1, [#allocation4]
    $region13: #{tpu_custom_call.1} parent=1 // pred_fallthru
      _
    // Predicated region
    $region14: #{tpu_custom_call.1} parent=1 // pred_check
      _
    $region15: #{tpu_custom_call.1} parent=1 // pred_check_branch
      %36 = sbr.rel (0) target = $region17
    $region16: #{tpu_custom_call.1} parent=1 // pred_region
      %37 = dma.done [#allocation4], 256
    $region17: #{tpu_custom_call.1} parent=1 // pred_fallthru
      _
    %38 = vsyncpa [#allocation3], 1
    %39 = vsyncpa [#allocation4], 1

</llo_original>
